<compile_context>
chip_gen: v6e
topology: v6e:2x2x1
jax: 0.10.0
libtpu: 0.0.40
codegen_flags: <defaults>
</compile_context>

<pallas_src>
import functools

import jax
import jax.numpy as jnp
from jax.experimental import pallas as pl
from jax.experimental.pallas import tpu as pltpu


# ---------------------------------------------------------------------------
# MADE mask construction (plain JAX glue — mirrors
# MaskedLinear._get_mask_and_degrees for is_output=False, random_mask=False).
# ---------------------------------------------------------------------------
def _made_hidden_degrees(out_features, autoregressive_features):
    max_ = max(1, autoregressive_features - 1)
    min_ = min(1, autoregressive_features - 1)
    return jnp.arange(out_features, dtype=jnp.int32) % max_ + min_


def _hidden_mask(in_degrees, out_features, autoregressive_features):
    out_degrees = _made_hidden_degrees(out_features, autoregressive_features)
    mask = (out_degrees[:, None] >= in_degrees[None, :]).astype(jnp.float32)
    return mask, out_degrees


def _round_up(x, m):
    return ((x + m - 1) // m) * m


@functools.lru_cache(maxsize=None)
def _vmem_capacity_bytes():
    """Physical per-core VMEM; conservative 64 MiB (v7x) if the query fails."""
    try:
        return int(pltpu.get_tpu_info().vmem_capacity_bytes)
    except Exception:
        return 64 * 1024 * 1024


# ---------------------------------------------------------------------------
# One-time parameter preparation (model init, NOT per forward call):
#   * apply the MADE mask,
#   * transpose to (in_features, out_features) so the kernel contracts on the
#     RHS leading axis (MXU-friendly, no per-step weight relayout),
#   * zero-pad features to a multiple of 128 lanes,
#   * cast matmul inputs to `compute_dtype` (bf16 default); biases stay f32.
# ---------------------------------------------------------------------------
def prepare_masked_residual_params(w0, mask0, b0, w1, mask1, b1,
                                   *, compute_dtype=jnp.bfloat16):
    F = w0.shape[0]
    Fp = max(128, _round_up(F, 128))

    def prep_w(w, m):
        wt = (w * m).T.astype(compute_dtype)               # (in, out) = (K, N)
        return jnp.zeros((Fp, Fp), compute_dtype).at[:F, :F].set(wt)

    def prep_b(b):
        return jnp.zeros((1, Fp), jnp.float32).at[0, :F].set(
            b.astype(jnp.float32))

    return (prep_w(w0, mask0), prep_b(b0), prep_w(w1, mask1), prep_b(b1))


# ---------------------------------------------------------------------------
# Pallas kernel: relu -> masked linear -> relu -> masked linear -> residual.
# Weights arrive pre-masked and pre-transposed to (K, N); matmul inputs are in
# the weights' dtype (bf16 fast path), accumulation and residual are f32.
# ---------------------------------------------------------------------------
def masked_residual_block_kernel(x_ref, w0_ref, b0_ref, w1_ref, b1_ref, o_ref):
    cdt = w0_ref.dtype                                    # matmul input dtype
    x = x_ref[...]                                        # (TB, Fp) f32

    # activation -> MaskedLinear 0
    t = jnp.maximum(x, 0.0).astype(cdt)
    t = jnp.dot(t, w0_ref[...], preferred_element_type=jnp.float32)
    t = t + b0_ref[...]

    # activation -> dropout(p=0.0) == identity -> MaskedLinear 1
    t = jnp.maximum(t, 0.0).astype(cdt)
    t = jnp.dot(t, w1_ref[...], preferred_element_type=jnp.float32)
    t = t + b1_ref[...]

    # residual; re-read x from the ref so the (TB, Fp) value is not kept live
    # across both matmuls (cheap vld, slack slot when MXU-bound).
    o_ref[...] = x_ref[...] + t


@functools.partial(jax.jit,
                   static_argnames=("block_b", "single_buffer_weights"))
def _masked_residual_block_impl(x, w0p, b0p, w1p, b1p, *,
                                block_b=512, single_buffer_weights=True):
    B, F = x.shape
    Fp = w0p.shape[0]
    assert Fp >= F and Fp % 128 == 0, "params not prepared for this x"

    # Batch tiling: multiple-of-8 tiles; >= 2 grid steps when possible so the
    # 'parallel' axis can be split across v7x's two TensorCores; tile size is
    # balanced so the last tile is not mostly zero padding.
    B8 = _round_up(B, 8)
    n_tiles = max(pl.cdiv(B8, block_b), 2) if B8 >= 16 else 1
    TB = _round_up(pl.cdiv(B8, n_tiles), 8)
    Bp = n_tiles * TB

    # Pad x only when actually needed (skip the extra HBM pass otherwise).
    if (Bp, Fp) != (B, F):
        x_p = jnp.pad(x, ((0, Bp - B), (0, Fp - F)))
    else:
        x_p = x

    wbytes = jnp.dtype(w0p.dtype).itemsize
    wbuf = 1 if single_buffer_weights else 2

    x_spec = pl.BlockSpec((TB, Fp), lambda i: (i, 0))
    o_spec = pl.BlockSpec((TB, Fp), lambda i: (i, 0))
    if single_buffer_weights:
        # Grid-invariant blocks: single-buffer them to halve resident VMEM.
        w_spec = pl.BlockSpec((Fp, Fp), lambda i: (0, 0),
                              pipeline_mode=pl.Buffered(1))
        b_spec = pl.BlockSpec((1, Fp), lambda i: (0, 0),
                              pipeline_mode=pl.Buffered(1))
    else:
        w_spec = pl.BlockSpec((Fp, Fp), lambda i: (0, 0))
        b_spec = pl.BlockSpec((1, Fp), lambda i: (0, 0))

    # VMEM budget: double-buffered x/out tiles + resident weights/biases +
    # headroom for temporaries; clamped to ~75% of the physical per-core VMEM
    # (64 MiB on v7x, 128 MiB on v5e/v6e).
    # TODO(synk): large-F fallback (f32 Fp >= ~2048 on v7x) — tile the weights
    # into (Fp, 256) output panels with an accumulator scratch, or keep them
    # in HBM (memory_space=pl.ANY) with manual double-buffering.
    needed = (2 * 2 * TB * Fp * 4                 # x / out, double-buffered
              + wbuf * 2 * Fp * Fp * wbytes       # two weights
              + wbuf * 2 * Fp * 4                 # two biases (f32)
              + 2 * TB * Fp * 4)                  # in-kernel temporaries
    vmem_limit = int(min(max(needed * 3 // 2, 32 * 1024 * 1024),
                         _vmem_capacity_bytes() * 3 // 4))

    cost = pl.CostEstimate(
        flops=2 * 2 * Bp * Fp * Fp + 4 * Bp * Fp,
        transcendentals=0,
        bytes_accessed=2 * Bp * Fp * 4 + 2 * Fp * Fp * wbytes + 2 * Fp * 4,
    )

    out_p = pl.pallas_call(
        masked_residual_block_kernel,
        out_shape=jax.ShapeDtypeStruct((Bp, Fp), x.dtype),
        grid=(n_tiles,),
        in_specs=[x_spec, w_spec, b_spec, w_spec, b_spec],
        out_specs=o_spec,
        compiler_params=pltpu.CompilerParams(
            dimension_semantics=("parallel",),
            vmem_limit_bytes=vmem_limit,
        ),
        cost_estimate=cost,
    )(x_p, w0p, b0p, w1p, b1p)

    if (Bp, Fp) != (B, F):
        out_p = out_p[:B, :F]
    return out_p


_SINGLE_BUFFER_WEIGHTS = None  # resolved on first call (capability probe)


def masked_residual_block(x, params, *, block_b=512):
    """Forward pass; `params` from prepare_masked_residual_params."""
    global _SINGLE_BUFFER_WEIGHTS
    if _SINGLE_BUFFER_WEIGHTS is None:
        try:
            out = jax.block_until_ready(
                _masked_residual_block_impl(
                    x, *params, block_b=block_b, single_buffer_weights=True))
            _SINGLE_BUFFER_WEIGHTS = True
            return out
        except Exception:
            # pl.Buffered(1) not supported by this JAX build — fall back to
            # the plain (double-buffered) grid-invariant specs.
            _SINGLE_BUFFER_WEIGHTS = False
    return _masked_residual_block_impl(
        x, *params, block_b=block_b,
        single_buffer_weights=_SINGLE_BUFFER_WEIGHTS)


# ---------------------------------------------------------------------------
# Pure-JAX reference for verification.
# ---------------------------------------------------------------------------
def reference_block(x, w0, mask0, b0, w1, mask1, b1):
    t = jax.nn.relu(x)
    t = t @ (w0 * mask0).T + b0
    t = jax.nn.relu(t)
    t = t @ (w1 * mask1).T + b1
    return x + t


if __name__ == "__main__":
    # Small synthetic config consistent with how MaskedResidualBlock is used
    # inside MADE: `features` hidden units whose in_degrees come from a
    # previous hidden MaskedLinear layer over `autoregressive_features` dims.
    batch = 8
    features = 32                 # len(in_degrees)
    autoregressive_features = 4

    in_degrees = _made_hidden_degrees(features, autoregressive_features)
    mask0, deg0 = _hidden_mask(in_degrees, features, autoregressive_features)
    mask1, deg1 = _hidden_mask(deg0, features, autoregressive_features)
    assert bool(jnp.all(deg1 >= in_degrees)), "degree check failed"

    # Deterministic parameter init (zero_initialization would make the block
    # an identity map; deterministic random weights exercise the kernel —
    # forward semantics are independent of init values).
    key = jax.random.PRNGKey(0)
    kx, k0, kb0, k1, kb1 = jax.random.split(key, 5)
    x = jax.random.normal(kx, (batch, features), dtype=jnp.float32)
    w0 = 0.1 * jax.random.normal(k0, (features, features), dtype=jnp.float32)
    b0 = 0.1 * jax.random.normal(kb0, (features,), dtype=jnp.float32)
    w1 = 0.1 * jax.random.normal(k1, (features, features), dtype=jnp.float32)
    b1 = 0.1 * jax.random.normal(kb1, (features,), dtype=jnp.float32)

    ref = reference_block(x, w0, mask0, b0, w1, mask1, b1)

    # Exactness check: f32 matmul-input path must match the reference tightly.
    params_f32 = prepare_masked_residual_params(
        w0, mask0, b0, w1, mask1, b1, compute_dtype=jnp.float32)
    out_f32 = jax.block_until_ready(masked_residual_block(x, params_f32))
    assert out_f32.shape == ref.shape, "shape mismatch vs reference (f32)"
    assert jnp.allclose(out_f32, ref, atol=1e-5, rtol=1e-5), "f32 mismatch"

    # Fast path: bf16 matmul inputs with f32 accumulation (default config).
    params_bf16 = prepare_masked_residual_params(
        w0, mask0, b0, w1, mask1, b1, compute_dtype=jnp.bfloat16)
    out_bf16 = jax.block_until_ready(masked_residual_block(x, params_bf16))
    assert out_bf16.shape == ref.shape, "shape mismatch vs reference (bf16)"
    assert jnp.allclose(out_bf16, ref, atol=3e-2, rtol=3e-2), "bf16 mismatch"

    # TODO(synk): optional `context` path (Linear + GLU) and BatchNorm1d are
    # not exercised here (module defaults: context=None, use_batch_norm=False).

    print("KERNEL_OK")
</pallas_src>

<mosaic_0001>
module attributes {stable_mosaic.version = 11 : i64} {
  func.func @masked_residual_block_kernel(%arg0: i32, %arg1: memref<8x128xf32, #tpu.memory_space<vmem>>, %arg2: memref<128x128xf32, #tpu.memory_space<vmem>>, %arg3: memref<1x128xf32, #tpu.memory_space<vmem>>, %arg4: memref<128x128xf32, #tpu.memory_space<vmem>>, %arg5: memref<1x128xf32, #tpu.memory_space<vmem>>, %arg6: memref<8x128xf32, #tpu.memory_space<vmem>>) attributes {dimension_semantics = [#tpu.dimension_semantics<parallel>], iteration_bounds = array<i64: 1>, scalar_prefetch = 0 : i64, scratch_operands = 0 : i64, tpu.core_type = #tpu.core_type<tc>, window_params = [{transform_indices = @transform_0, window_bounds = array<i64: 8, 128>}, {pipeline_mode = #tpu.pipeline_mode<synchronous>, transform_indices = @transform_1, window_bounds = array<i64: 128, 128>}, {pipeline_mode = #tpu.pipeline_mode<synchronous>, transform_indices = @transform_2, window_bounds = array<i64: 1, 128>}, {pipeline_mode = #tpu.pipeline_mode<synchronous>, transform_indices = @transform_3, window_bounds = array<i64: 128, 128>}, {pipeline_mode = #tpu.pipeline_mode<synchronous>, transform_indices = @transform_4, window_bounds = array<i64: 1, 128>}, {transform_indices = @transform_5, window_bounds = array<i64: 8, 128>}]} {
    %c0 = arith.constant 0 : index
    %c0_0 = arith.constant 0 : index
    %0 = vector.load %arg1[%c0, %c0_0] : memref<8x128xf32, #tpu.memory_space<vmem>>, vector<8x128xf32>
    %cst = arith.constant 0.000000e+00 : f32
    %1 = vector.broadcast %cst : f32 to vector<8x128xf32>
    %2 = arith.maximumf %0, %1 : vector<8x128xf32>
    %c0_1 = arith.constant 0 : index
    %c0_2 = arith.constant 0 : index
    %3 = vector.load %arg2[%c0_1, %c0_2] : memref<128x128xf32, #tpu.memory_space<vmem>>, vector<128x128xf32>
    %cst_3 = arith.constant dense<0.000000e+00> : vector<8x128xf32>
    %4 = tpu.matmul %2, %3, %cst_3 {dimension_numbers = #tpu.dot_dimension_numbers<[1], [0], [0], [1], [0, 0, 1, 1], [], []>} : vector<8x128xf32>, vector<128x128xf32>, vector<8x128xf32> -> vector<8x128xf32>
    %c0_4 = arith.constant 0 : index
    %c0_5 = arith.constant 0 : index
    %5 = vector.load %arg3[%c0_4, %c0_5] : memref<1x128xf32, #tpu.memory_space<vmem>>, vector<1x128xf32>
    %6 = vector.broadcast %5 : vector<1x128xf32> to vector<8x128xf32>
    %7 = arith.addf %4, %6 : vector<8x128xf32>
    %cst_6 = arith.constant 0.000000e+00 : f32
    %8 = vector.broadcast %cst_6 : f32 to vector<8x128xf32>
    %9 = arith.maximumf %7, %8 : vector<8x128xf32>
    %c0_7 = arith.constant 0 : index
    %c0_8 = arith.constant 0 : index
    %10 = vector.load %arg4[%c0_7, %c0_8] : memref<128x128xf32, #tpu.memory_space<vmem>>, vector<128x128xf32>
    %cst_9 = arith.constant dense<0.000000e+00> : vector<8x128xf32>
    %11 = tpu.matmul %9, %10, %cst_9 {dimension_numbers = #tpu.dot_dimension_numbers<[1], [0], [0], [1], [0, 0, 1, 1], [], []>} : vector<8x128xf32>, vector<128x128xf32>, vector<8x128xf32> -> vector<8x128xf32>
    %c0_10 = arith.constant 0 : index
    %c0_11 = arith.constant 0 : index
    %12 = vector.load %arg5[%c0_10, %c0_11] : memref<1x128xf32, #tpu.memory_space<vmem>>, vector<1x128xf32>
    %13 = vector.broadcast %12 : vector<1x128xf32> to vector<8x128xf32>
    %14 = arith.addf %11, %13 : vector<8x128xf32>
    %c0_12 = arith.constant 0 : index
    %c0_13 = arith.constant 0 : index
    %15 = vector.load %arg1[%c0_12, %c0_13] : memref<8x128xf32, #tpu.memory_space<vmem>>, vector<8x128xf32>
    %16 = arith.addf %15, %14 : vector<8x128xf32>
    %c0_14 = arith.constant 0 : index
    %c0_15 = arith.constant 0 : index
    %17 = vector.load %arg6[%c0_14, %c0_15] : memref<8x128xf32, #tpu.memory_space<vmem>>, vector<8x128xf32>
    tpu.vector_store %arg6[%c0_14, %c0_15], %16 {strides = array<i32>} : memref<8x128xf32, #tpu.memory_space<vmem>>, vector<8x128xf32>,
    return
  }
  func.func @transform_0(%arg0: i32) -> (i32, i32) {
    %c0_i32 = arith.constant 0 : i32
    %c0_i32_0 = arith.constant 0 : i32
    return %arg0, %c0_i32 : i32, i32
  }
  func.func @transform_1(%arg0: i32) -> (i32, i32) {
    %c0_i32 = arith.constant 0 : i32
    %c0_i32_0 = arith.constant 0 : i32
    %c0_i32_1 = arith.constant 0 : i32
    return %c0_i32, %c0_i32_0 : i32, i32
  }
  func.func @transform_2(%arg0: i32) -> (i32, i32) {
    %c0_i32 = arith.constant 0 : i32
    %c0_i32_0 = arith.constant 0 : i32
    %c0_i32_1 = arith.constant 0 : i32
    return %c0_i32, %c0_i32_0 : i32, i32
  }
  func.func @transform_3(%arg0: i32) -> (i32, i32) {
    %c0_i32 = arith.constant 0 : i32
    %c0_i32_0 = arith.constant 0 : i32
    %c0_i32_1 = arith.constant 0 : i32
    return %c0_i32, %c0_i32_0 : i32, i32
  }
  func.func @transform_4(%arg0: i32) -> (i32, i32) {
    %c0_i32 = arith.constant 0 : i32
    %c0_i32_0 = arith.constant 0 : i32
    %c0_i32_1 = arith.constant 0 : i32
    return %c0_i32, %c0_i32_0 : i32, i32
  }
  func.func @transform_5(%arg0: i32) -> (i32, i32) {
    %c0_i32 = arith.constant 0 : i32
    %c0_i32_0 = arith.constant 0 : i32
    return %arg0, %c0_i32 : i32, i32
  }
}

module attributes {stable_mosaic.version = 11 : i64} {
  func.func @masked_residual_block_kernel(%arg0: i32, %arg1: memref<8x128xf32, #tpu.memory_space<vmem>>, %arg2: memref<128x128xf32, #tpu.memory_space<vmem>>, %arg3: memref<1x128xf32, #tpu.memory_space<vmem>>, %arg4: memref<128x128xf32, #tpu.memory_space<vmem>>, %arg5: memref<1x128xf32, #tpu.memory_space<vmem>>, %arg6: memref<8x128xf32, #tpu.memory_space<vmem>>) attributes {dimension_semantics = [#tpu.dimension_semantics<parallel>], iteration_bounds = array<i64: 1>, scalar_prefetch = 0 : i64, scratch_operands = 0 : i64, tpu.core_type = #tpu.core_type<tc>, window_params = [{transform_indices = @transform_0, window_bounds = array<i64: 8, 128>}, {pipeline_mode = #tpu.pipeline_mode<synchronous>, transform_indices = @transform_1, window_bounds = array<i64: 128, 128>}, {pipeline_mode = #tpu.pipeline_mode<synchronous>, transform_indices = @transform_2, window_bounds = array<i64: 1, 128>}, {pipeline_mode = #tpu.pipeline_mode<synchronous>, transform_indices = @transform_3, window_bounds = array<i64: 128, 128>}, {pipeline_mode = #tpu.pipeline_mode<synchronous>, transform_indices = @transform_4, window_bounds = array<i64: 1, 128>}, {transform_indices = @transform_5, window_bounds = array<i64: 8, 128>}]} {
    %c0 = arith.constant 0 : index
    %c0_0 = arith.constant 0 : index
    %0 = vector.load %arg1[%c0, %c0_0] : memref<8x128xf32, #tpu.memory_space<vmem>>, vector<8x128xf32>
    %cst = arith.constant 0.000000e+00 : f32
    %1 = vector.broadcast %cst : f32 to vector<8x128xf32>
    %2 = arith.maximumf %0, %1 : vector<8x128xf32>
    %c0_1 = arith.constant 0 : index
    %c0_2 = arith.constant 0 : index
    %3 = vector.load %arg2[%c0_1, %c0_2] : memref<128x128xf32, #tpu.memory_space<vmem>>, vector<128x128xf32>
    %cst_3 = arith.constant dense<0.000000e+00> : vector<8x128xf32>
    %4 = tpu.matmul %2, %3, %cst_3 {dimension_numbers = #tpu.dot_dimension_numbers<[1], [0], [0], [1], [0, 0, 1, 1], [], []>} : vector<8x128xf32>, vector<128x128xf32>, vector<8x128xf32> -> vector<8x128xf32>
    %c0_4 = arith.constant 0 : index
    %c0_5 = arith.constant 0 : index
    %5 = vector.load %arg3[%c0_4, %c0_5] : memref<1x128xf32, #tpu.memory_space<vmem>>, vector<1x128xf32>
    %6 = vector.broadcast %5 : vector<1x128xf32> to vector<8x128xf32>
    %7 = arith.addf %4, %6 : vector<8x128xf32>
    %cst_6 = arith.constant 0.000000e+00 : f32
    %8 = vector.broadcast %cst_6 : f32 to vector<8x128xf32>
    %9 = arith.maximumf %7, %8 : vector<8x128xf32>
    %c0_7 = arith.constant 0 : index
    %c0_8 = arith.constant 0 : index
    %10 = vector.load %arg4[%c0_7, %c0_8] : memref<128x128xf32, #tpu.memory_space<vmem>>, vector<128x128xf32>
    %cst_9 = arith.constant dense<0.000000e+00> : vector<8x128xf32>
    %11 = tpu.matmul %9, %10, %cst_9 {dimension_numbers = #tpu.dot_dimension_numbers<[1], [0], [0], [1], [0, 0, 1, 1], [], []>} : vector<8x128xf32>, vector<128x128xf32>, vector<8x128xf32> -> vector<8x128xf32>
    %c0_10 = arith.constant 0 : index
    %c0_11 = arith.constant 0 : index
    %12 = vector.load %arg5[%c0_10, %c0_11] : memref<1x128xf32, #tpu.memory_space<vmem>>, vector<1x128xf32>
    %13 = vector.broadcast %12 : vector<1x128xf32> to vector<8x128xf32>
    %14 = arith.addf %11, %13 : vector<8x128xf32>
    %c0_12 = arith.constant 0 : index
    %c0_13 = arith.constant 0 : index
    %15 = vector.load %arg1[%c0_12, %c0_13] : memref<8x128xf32, #tpu.memory_space<vmem>>, vector<8x128xf32>
    %16 = arith.addf %15, %14 : vector<8x128xf32>
    %c0_14 = arith.constant 0 : index
    %c0_15 = arith.constant 0 : index
    %17 = vector.load %arg6[%c0_14, %c0_15] : memref<8x128xf32, #tpu.memory_space<vmem>>, vector<8x128xf32>
    tpu.vector_store %arg6[%c0_14, %c0_15], %16 {strides = array<i32>} : memref<8x128xf32, #tpu.memory_space<vmem>>, vector<8x128xf32>,
    return
  }
  func.func @transform_0(%arg0: i32) -> (i32, i32) {
    %c0_i32 = arith.constant 0 : i32
    %c0_i32_0 = arith.constant 0 : i32
    return %arg0, %c0_i32 : i32, i32
  }
  func.func @transform_1(%arg0: i32) -> (i32, i32) {
    %c0_i32 = arith.constant 0 : i32
    %c0_i32_0 = arith.constant 0 : i32
    %c0_i32_1 = arith.constant 0 : i32
    return %c0_i32, %c0_i32_0 : i32, i32
  }
  func.func @transform_2(%arg0: i32) -> (i32, i32) {
    %c0_i32 = arith.constant 0 : i32
    %c0_i32_0 = arith.constant 0 : i32
    %c0_i32_1 = arith.constant 0 : i32
    return %c0_i32, %c0_i32_0 : i32, i32
  }
  func.func @transform_3(%arg0: i32) -> (i32, i32) {
    %c0_i32 = arith.constant 0 : i32
    %c0_i32_0 = arith.constant 0 : i32
    %c0_i32_1 = arith.constant 0 : i32
    return %c0_i32, %c0_i32_0 : i32, i32
  }
  func.func @transform_4(%arg0: i32) -> (i32, i32) {
    %c0_i32 = arith.constant 0 : i32
    %c0_i32_0 = arith.constant 0 : i32
    %c0_i32_1 = arith.constant 0 : i32
    return %c0_i32, %c0_i32_0 : i32, i32
  }
  func.func @transform_5(%arg0: i32) -> (i32, i32) {
    %c0_i32 = arith.constant 0 : i32
    %c0_i32_0 = arith.constant 0 : i32
    return %arg0, %c0_i32 : i32, i32
  }
}

</mosaic_0001>

<llo_original>
// kernel: _masked_residual_block_impl.1
$region0: #{_masked_residual_block_impl.1}
  #allocation0 [shape = 'u32[]', space=smem, size = 0x4, offset = 0x4, fixed_abs, tag = 'smem constant byte address 0x4 - core index']
  #allocation1 [shape = 'u32[144,128]{1,0:T(1,128)}', space=vmem, size = 0x12000, scoped, tag = 'internal scratch']
  %s0 = inlined_call_operand.vmem [shape: f32[8,128], index: 0, kind: input, shape index: {}]
  %s1 = inlined_call_operand.hbm [shape: f32[128,128], index: 1, kind: input, shape index: {}]
  %s2 = inlined_call_operand.vmem [shape: f32[1,128], index: 2, kind: input, shape index: {}]
  %s3 = inlined_call_operand.hbm [shape: f32[128,128], index: 3, kind: input, shape index: {}]
  %s4 = inlined_call_operand.vmem [shape: f32[1,128], index: 4, kind: input, shape index: {}]
  %s5 = inlined_call_operand.hbm [shape: f32[8,128], index: 5, kind: output, shape index: {}]
  %s6 = sld [smem:[#allocation0]]
  $region38: #{_masked_residual_block_impl.1} parent=0
    _
  %s8 = ssub.s32 1, %s6
  %s9 = scalar_select 0, %s8, %s6
  $region1: #{_masked_residual_block_impl.1} parent=0
    #allocation2 [shape = 'u8[65536]{0}', space=vmem, size = 0x10000, scoped, tag = 'input window, operand 1, single buffered']
    #allocation3 [shape = 's32[1]{0}', space=sflag, size = 0x4, scoped, tag = 'scoped memory for _masked_residual_block_impl.1']
    #allocation4 [shape = 's32[1]{0}', space=sflag, size = 0x4, scoped, tag = 'scoped memory for _masked_residual_block_impl.1']
    #allocation5 [shape = 'u8[65536]{0}', space=vmem, size = 0x10000, scoped, tag = 'input window, operand 3, single buffered']
    #allocation6 [shape = 's32[1]{0}', space=sflag, size = 0x4, scoped, tag = 'scoped memory for _masked_residual_block_impl.1']
    #allocation7 [shape = 'u8[4096]{0}', space=vmem, size = 0x1000, scoped, tag = 'output window, operand 0, single buffered']
    %10 = vsyncpa [#allocation3], 0
    %11 = vsyncpa [#allocation6], 0
    %12 = vsyncpa [#allocation4], 0
    // Predicated region
    $region2: #{_masked_residual_block_impl.1} parent=1 // pred_check
      _
    $region3: #{_masked_residual_block_impl.1} parent=1 // pred_check_branch
      %14 = sbr.rel (0) target = $region5
    $region4: #{_masked_residual_block_impl.1} parent=1 // pred_region
      _
    $region5: #{_masked_residual_block_impl.1} parent=1 // pred_fallthru
      _
    // Predicated region
    $region6: #{_masked_residual_block_impl.1} parent=1 // pred_check
      _
    $region7: #{_masked_residual_block_impl.1} parent=1 // pred_check_branch
      %16 = sbr.rel (0) target = $region9
    $region8: #{_masked_residual_block_impl.1} parent=1 // pred_region
      %s18 = ssub.s32 2048, 2048
      %19 = vsyncadd [#allocation3], %s18
      %s20 = sshll.u32 [#allocation2], 4
      %s21 = int_to_ptr.vmem [resolvable:$true] %s20
      %26 = dma.hbm_to_vmem [thread:$0]  %s1, 2048, %s21, [#allocation3], 128, 128, 8
    $region9: #{_masked_residual_block_impl.1} parent=1 // pred_fallthru
      _
    // Predicated region
    $region10: #{_masked_residual_block_impl.1} parent=1 // pred_check
      _
    $region11: #{_masked_residual_block_impl.1} parent=1 // pred_check_branch
      %28 = sbr.rel (0) target = $region13
    $region12: #{_masked_residual_block_impl.1} parent=1 // pred_region
      _
    $region13: #{_masked_residual_block_impl.1} parent=1 // pred_fallthru
      _
    // Predicated region
    $region14: #{_masked_residual_block_impl.1} parent=1 // pred_check
      _
    $region15: #{_masked_residual_block_impl.1} parent=1 // pred_check_branch
      %30 = sbr.rel (0) target = $region17
    $region16: #{_masked_residual_block_impl.1} parent=1 // pred_region
      %s32 = ssub.s32 2048, 2048
      %33 = vsyncadd [#allocation6], %s32
      %s34 = sshll.u32 [#allocation5], 4
      %s35 = int_to_ptr.vmem [resolvable:$true] %s34
      %40 = dma.hbm_to_vmem [thread:$0]  %s3, 2048, %s35, [#allocation6], 128, 128, 8
    $region17: #{_masked_residual_block_impl.1} parent=1 // pred_fallthru
      _
    // Predicated region
    $region18: #{_masked_residual_block_impl.1} parent=1 // pred_check
      _
    $region19: #{_masked_residual_block_impl.1} parent=1 // pred_check_branch
      %42 = sbr.rel (0) target = $region21
    $region20: #{_masked_residual_block_impl.1} parent=1 // pred_region
      _
    $region21: #{_masked_residual_block_impl.1} parent=1 // pred_fallthru
      _
    // Predicated region
    $region22: #{_masked_residual_block_impl.1} parent=1 // pred_check
      _
    $region23: #{_masked_residual_block_impl.1} parent=1 // pred_check_branch
      %44 = sbr.rel (0) target = $region25
    $region24: #{_masked_residual_block_impl.1} parent=1 // pred_region
      %45 = dma.done [#allocation3], 2048
    $region25: #{_masked_residual_block_impl.1} parent=1 // pred_fallthru
      _
    // Predicated region
    $region26: #{_masked_residual_block_impl.1} parent=1 // pred_check
      _
    $region27: #{_masked_residual_block_impl.1} parent=1 // pred_check_branch
      %47 = sbr.rel (0) target = $region29
    $region28: #{_masked_residual_block_impl.1} parent=1 // pred_region
      %48 = dma.done [#allocation6], 2048
    $region29: #{_masked_residual_block_impl.1} parent=1 // pred_fallthru
      _
    %v49 = vld [vmem:[%s0] sm:$0xff]
    %v50 = vmax.f32 %v49, 0.0
    %v51 = vld [vmem:[#allocation2] sm:$0xff]
    %v52 = vld [vmem:[#allocation2 + $0x8] sm:$0xff]
    %v53 = vld [vmem:[#allocation2 + $0x10] sm:$0xff]
    %v54 = vld [vmem:[#allocation2 + $0x18] sm:$0xff]
    %v55 = vld [vmem:[#allocation2 + $0x20] sm:$0xff]
    %v56 = vld [vmem:[#allocation2 + $0x28] sm:$0xff]
    %v57 = vld [vmem:[#allocation2 + $0x30] sm:$0xff]
    %v58 = vld [vmem:[#allocation2 + $0x38] sm:$0xff]
    %v59 = vld [vmem:[#allocation2 + $0x40] sm:$0xff]
    %v60 = vld [vmem:[#allocation2 + $0x48] sm:$0xff]
    %v61 = vld [vmem:[#allocation2 + $0x50] sm:$0xff]
    %v62 = vld [vmem:[#allocation2 + $0x58] sm:$0xff]
    %v63 = vld [vmem:[#allocation2 + $0x60] sm:$0xff]
    %v64 = vld [vmem:[#allocation2 + $0x68] sm:$0xff]
    %v65 = vld [vmem:[#allocation2 + $0x70] sm:$0xff]
    %v66 = vld [vmem:[#allocation2 + $0x78] sm:$0xff]
    %v67 = vld [vmem:[%s2] sm:$0x1]
    %v69 = vlaneseq
    %v70 = vshrl.u32 %v69, 7
    %v71 = vsub.s32 0, %v70
    %v72 = vrot.slane %v67, %v71
    %74 = vmatprep.subr.mxu0 0.0
    %75 = vmatpush1.msra.mxu0 %v66
    %76 = vmatprep.subr.mxu0 0.0
    %77 = vmatpush1.msra.mxu0 %v65
    %78 = vmatprep.subr.mxu0 0.0
    %79 = vmatpush1.msra.mxu0 %v64
    %80 = vmatprep.subr.mxu0 0.0
    %81 = vmatpush1.msra.mxu0 %v63
    %82 = vmatprep.subr.mxu0 0.0
    %83 = vmatpush1.msra.mxu0 %v62
    %84 = vmatprep.subr.mxu0 0.0
    %85 = vmatpush1.msra.mxu0 %v61
    %86 = vmatprep.subr.mxu0 0.0
    %87 = vmatpush1.msra.mxu0 %v60
    %88 = vmatprep.subr.mxu0 0.0
    %89 = vmatpush1.msra.mxu0 %v59
    %90 = vmatprep.subr.mxu0 0.0
    %91 = vmatpush1.msra.mxu0 %v58
    %92 = vmatprep.subr.mxu0 0.0
    %93 = vmatpush1.msra.mxu0 %v57
    %94 = vmatprep.subr.mxu0 0.0
    %95 = vmatpush1.msra.mxu0 %v56
    %96 = vmatprep.subr.mxu0 0.0
    %97 = vmatpush1.msra.mxu0 %v55
    %98 = vmatprep.subr.mxu0 0.0
    %99 = vmatpush1.msra.mxu0 %v54
    %100 = vmatprep.subr.mxu0 0.0
    %101 = vmatpush1.msra.mxu0 %v53
    %102 = vmatprep.subr.mxu0 0.0
    %103 = vmatpush1.msra.mxu0 %v52
    %104 = vmatprep.subr.mxu0 0.0
    %105 = vmatpush1.msra.mxu0 %v51
    %106 = vmatprep.subr.mxu0 0.0
    %107 = vmatpush2.msra.mxu0 0.0
    %108 = vmatprep.subr.mxu0 0.0
    %109 = vmatpush2.msra.mxu0 0.0
    %110 = vmatprep.subr.mxu0 0.0
    %111 = vmatpush2.msra.mxu0 0.0
    %112 = vmatprep.subr.mxu0 0.0
    %113 = vmatpush2.msra.mxu0 0.0
    %114 = vmatprep.subr.mxu0 0.0
    %115 = vmatpush2.msra.mxu0 0.0
    %116 = vmatprep.subr.mxu0 0.0
    %117 = vmatpush2.msra.mxu0 0.0
    %118 = vmatprep.subr.mxu0 0.0
    %119 = vmatpush2.msra.mxu0 0.0
    %120 = vmatprep.subr.mxu0 0.0
    %121 = vmatpush2.msra.mxu0 0.0
    %122 = vmatprep.subr.mxu0 0.0
    %123 = vmatpush2.msra.mxu0 0.0
    %124 = vmatprep.subr.mxu0 0.0
    %125 = vmatpush2.msra.mxu0 0.0
    %126 = vmatprep.subr.mxu0 0.0
    %127 = vmatpush2.msra.mxu0 0.0
    %128 = vmatprep.subr.mxu0 0.0
    %129 = vmatpush2.msra.mxu0 0.0
    %130 = vmatprep.subr.mxu0 0.0
    %131 = vmatpush2.msra.mxu0 0.0
    %132 = vmatprep.subr.mxu0 0.0
    %133 = vmatpush2.msra.mxu0 0.0
    %134 = vmatprep.subr.mxu0 0.0
    %135 = vmatpush2.msra.mxu0 0.0
    %136 = vmatprep.subr.mxu0 0.0
    %137 = vmatpush2.msra.mxu0 0.0
    %138 = vmatprep.mubr.f32.mxu0 0.0
    %139 = vmatmul.mubr.f32.gmra.mxu0 %v50
    %v140 = vpop.f32.mrf.mxu0
    %v141 = vadd.f32 %v72, %v140
    %v142 = vpop.f32.mrf.mxu0
    %143 = vdwg.mxu0
    %v144 = vmax.f32 %v141, 0.0
    %v145 = vld [vmem:[#allocation5] sm:$0xff]
    %v146 = vld [vmem:[#allocation5 + $0x8] sm:$0xff]
    %v147 = vld [vmem:[#allocation5 + $0x10] sm:$0xff]
    %v148 = vld [vmem:[#allocation5 + $0x18] sm:$0xff]
    %v149 = vld [vmem:[#allocation5 + $0x20] sm:$0xff]
    %v150 = vld [vmem:[#allocation5 + $0x28] sm:$0xff]
    %v151 = vld [vmem:[#allocation5 + $0x30] sm:$0xff]
    %v152 = vld [vmem:[#allocation5 + $0x38] sm:$0xff]
    %v153 = vld [vmem:[#allocation5 + $0x40] sm:$0xff]
    %v154 = vld [vmem:[#allocation5 + $0x48] sm:$0xff]
    %v155 = vld [vmem:[#allocation5 + $0x50] sm:$0xff]
    %v156 = vld [vmem:[#allocation5 + $0x58] sm:$0xff]
    %v157 = vld [vmem:[#allocation5 + $0x60] sm:$0xff]
    %v158 = vld [vmem:[#allocation5 + $0x68] sm:$0xff]
    %v159 = vld [vmem:[#allocation5 + $0x70] sm:$0xff]
    %v160 = vld [vmem:[#allocation5 + $0x78] sm:$0xff]
    %v161 = vld [vmem:[%s4] sm:$0x1]
    %v163 = vlaneseq
    %v164 = vshrl.u32 %v163, 7
    %v165 = vsub.s32 0, %v164
    %v166 = vrot.slane %v161, %v165
    %168 = vmatprep.subr.mxu0 0.0
    %169 = vmatpush1.msra.mxu0 %v160
    %170 = vmatprep.subr.mxu0 0.0
    %171 = vmatpush1.msra.mxu0 %v159
    %172 = vmatprep.subr.mxu0 0.0
    %173 = vmatpush1.msra.mxu0 %v158
    %174 = vmatprep.subr.mxu0 0.0
    %175 = vmatpush1.msra.mxu0 %v157
    %176 = vmatprep.subr.mxu0 0.0
    %177 = vmatpush1.msra.mxu0 %v156
    %178 = vmatprep.subr.mxu0 0.0
    %179 = vmatpush1.msra.mxu0 %v155
    %180 = vmatprep.subr.mxu0 0.0
    %181 = vmatpush1.msra.mxu0 %v154
    %182 = vmatprep.subr.mxu0 0.0
    %183 = vmatpush1.msra.mxu0 %v153
    %184 = vmatprep.subr.mxu0 0.0
    %185 = vmatpush1.msra.mxu0 %v152
    %186 = vmatprep.subr.mxu0 0.0
    %187 = vmatpush1.msra.mxu0 %v151
    %188 = vmatprep.subr.mxu0 0.0
    %189 = vmatpush1.msra.mxu0 %v150
    %190 = vmatprep.subr.mxu0 0.0
    %191 = vmatpush1.msra.mxu0 %v149
    %192 = vmatprep.subr.mxu0 0.0
    %193 = vmatpush1.msra.mxu0 %v148
    %194 = vmatprep.subr.mxu0 0.0
    %195 = vmatpush1.msra.mxu0 %v147
    %196 = vmatprep.subr.mxu0 0.0
    %197 = vmatpush1.msra.mxu0 %v146
    %198 = vmatprep.subr.mxu0 0.0
    %199 = vmatpush1.msra.mxu0 %v145
    %200 = vmatprep.subr.mxu0 0.0
    %201 = vmatpush2.msra.mxu0 0.0
    %202 = vmatprep.subr.mxu0 0.0
    %203 = vmatpush2.msra.mxu0 0.0
    %204 = vmatprep.subr.mxu0 0.0
    %205 = vmatpush2.msra.mxu0 0.0
    %206 = vmatprep.subr.mxu0 0.0
    %207 = vmatpush2.msra.mxu0 0.0
    %208 = vmatprep.subr.mxu0 0.0
    %209 = vmatpush2.msra.mxu0 0.0
    %210 = vmatprep.subr.mxu0 0.0
    %211 = vmatpush2.msra.mxu0 0.0
    %212 = vmatprep.subr.mxu0 0.0
    %213 = vmatpush2.msra.mxu0 0.0
    %214 = vmatprep.subr.mxu0 0.0
    %215 = vmatpush2.msra.mxu0 0.0
    %216 = vmatprep.subr.mxu0 0.0
    %217 = vmatpush2.msra.mxu0 0.0
    %218 = vmatprep.subr.mxu0 0.0
    %219 = vmatpush2.msra.mxu0 0.0
    %220 = vmatprep.subr.mxu0 0.0
    %221 = vmatpush2.msra.mxu0 0.0
    %222 = vmatprep.subr.mxu0 0.0
    %223 = vmatpush2.msra.mxu0 0.0
    %224 = vmatprep.subr.mxu0 0.0
    %225 = vmatpush2.msra.mxu0 0.0
    %226 = vmatprep.subr.mxu0 0.0
    %227 = vmatpush2.msra.mxu0 0.0
    %228 = vmatprep.subr.mxu0 0.0
    %229 = vmatpush2.msra.mxu0 0.0
    %230 = vmatprep.subr.mxu0 0.0
    %231 = vmatpush2.msra.mxu0 0.0
    %232 = vmatprep.mubr.f32.mxu0 0.0
    %233 = vmatmul.mubr.f32.gmra.mxu0 %v144
    %v234 = vpop.f32.mrf.mxu0
    %v235 = vadd.f32 %v166, %v234
    %v236 = vpop.f32.mrf.mxu0
    %237 = vdwg.mxu0
    %v238 = vadd.f32 %v49, %v235
    %239 = vst [vmem:[#allocation7] sm:$0xff] %v238
    // Predicated region
    $region30: #{_masked_residual_block_impl.1} parent=1 // pred_check
      _
    $region31: #{_masked_residual_block_impl.1} parent=1 // pred_check_branch
      %241 = sbr.rel (0) target = $region33
    $region32: #{_masked_residual_block_impl.1} parent=1 // pred_region
      %s243 = ssub.s32 128, 128
      %244 = vsyncadd [#allocation4], %s243
      %s246 = sshll.u32 [#allocation7], 4
      %s247 = int_to_ptr.vmem [resolvable:$true] %s246
      %249 = dma.vmem_to_hbm [thread:$0]  %s247, 128, %s5, [#allocation4]
    $region33: #{_masked_residual_block_impl.1} parent=1 // pred_fallthru
      _
    // Predicated region
    $region34: #{_masked_residual_block_impl.1} parent=1 // pred_check
      _
    $region35: #{_masked_residual_block_impl.1} parent=1 // pred_check_branch
      %251 = sbr.rel (0) target = $region37
    $region36: #{_masked_residual_block_impl.1} parent=1 // pred_region
      %252 = dma.done [#allocation4], 128
    $region37: #{_masked_residual_block_impl.1} parent=1 // pred_fallthru
      _
    %253 = vsyncpa [#allocation3], 1
    %254 = vsyncpa [#allocation6], 1
    %255 = vsyncpa [#allocation4], 1

// kernel: _masked_residual_block_impl.1
$region0: #{_masked_residual_block_impl.1}
  #allocation0 [shape = 'u32[]', space=smem, size = 0x4, offset = 0x4, fixed_abs, tag = 'smem constant byte address 0x4 - core index']
  #allocation1 [shape = 'u32[144,128]{1,0:T(1,128)}', space=vmem, size = 0x12000, scoped, tag = 'internal scratch']
  %s0 = inlined_call_operand.vmem [shape: f32[8,128], index: 0, kind: input, shape index: {}]
  %s1 = inlined_call_operand.hbm [shape: f32[128,128], index: 1, kind: input, shape index: {}]
  %s2 = inlined_call_operand.vmem [shape: f32[1,128], index: 2, kind: input, shape index: {}]
  %s3 = inlined_call_operand.hbm [shape: f32[128,128], index: 3, kind: input, shape index: {}]
  %s4 = inlined_call_operand.vmem [shape: f32[1,128], index: 4, kind: input, shape index: {}]
  %s5 = inlined_call_operand.hbm [shape: f32[8,128], index: 5, kind: output, shape index: {}]
  %s6 = sld [smem:[#allocation0]]
  $region38: #{_masked_residual_block_impl.1} parent=0
    _
  %s8 = ssub.s32 1, %s6
  %s9 = scalar_select 0, %s8, %s6
  $region1: #{_masked_residual_block_impl.1} parent=0
    #allocation2 [shape = 'u8[65536]{0}', space=vmem, size = 0x10000, scoped, tag = 'input window, operand 1, single buffered']
    #allocation3 [shape = 's32[1]{0}', space=sflag, size = 0x4, scoped, tag = 'scoped memory for _masked_residual_block_impl.1']
    #allocation4 [shape = 's32[1]{0}', space=sflag, size = 0x4, scoped, tag = 'scoped memory for _masked_residual_block_impl.1']
    #allocation5 [shape = 'u8[65536]{0}', space=vmem, size = 0x10000, scoped, tag = 'input window, operand 3, single buffered']
    #allocation6 [shape = 's32[1]{0}', space=sflag, size = 0x4, scoped, tag = 'scoped memory for _masked_residual_block_impl.1']
    #allocation7 [shape = 'u8[4096]{0}', space=vmem, size = 0x1000, scoped, tag = 'output window, operand 0, single buffered']
    %10 = vsyncpa [#allocation3], 0
    %11 = vsyncpa [#allocation6], 0
    %12 = vsyncpa [#allocation4], 0
    // Predicated region
    $region2: #{_masked_residual_block_impl.1} parent=1 // pred_check
      _
    $region3: #{_masked_residual_block_impl.1} parent=1 // pred_check_branch
      %14 = sbr.rel (0) target = $region5
    $region4: #{_masked_residual_block_impl.1} parent=1 // pred_region
      _
    $region5: #{_masked_residual_block_impl.1} parent=1 // pred_fallthru
      _
    // Predicated region
    $region6: #{_masked_residual_block_impl.1} parent=1 // pred_check
      _
    $region7: #{_masked_residual_block_impl.1} parent=1 // pred_check_branch
      %16 = sbr.rel (0) target = $region9
    $region8: #{_masked_residual_block_impl.1} parent=1 // pred_region
      %s18 = ssub.s32 2048, 2048
      %19 = vsyncadd [#allocation3], %s18
      %s20 = sshll.u32 [#allocation2], 4
      %s21 = int_to_ptr.vmem [resolvable:$true] %s20
      %26 = dma.hbm_to_vmem [thread:$0]  %s1, 2048, %s21, [#allocation3], 128, 128, 8
    $region9: #{_masked_residual_block_impl.1} parent=1 // pred_fallthru
      _
    // Predicated region
    $region10: #{_masked_residual_block_impl.1} parent=1 // pred_check
      _
    $region11: #{_masked_residual_block_impl.1} parent=1 // pred_check_branch
      %28 = sbr.rel (0) target = $region13
    $region12: #{_masked_residual_block_impl.1} parent=1 // pred_region
      _
    $region13: #{_masked_residual_block_impl.1} parent=1 // pred_fallthru
      _
    // Predicated region
    $region14: #{_masked_residual_block_impl.1} parent=1 // pred_check
      _
    $region15: #{_masked_residual_block_impl.1} parent=1 // pred_check_branch
      %30 = sbr.rel (0) target = $region17
    $region16: #{_masked_residual_block_impl.1} parent=1 // pred_region
      %s32 = ssub.s32 2048, 2048
      %33 = vsyncadd [#allocation6], %s32
      %s34 = sshll.u32 [#allocation5], 4
      %s35 = int_to_ptr.vmem [resolvable:$true] %s34
      %40 = dma.hbm_to_vmem [thread:$0]  %s3, 2048, %s35, [#allocation6], 128, 128, 8
    $region17: #{_masked_residual_block_impl.1} parent=1 // pred_fallthru
      _
    // Predicated region
    $region18: #{_masked_residual_block_impl.1} parent=1 // pred_check
      _
    $region19: #{_masked_residual_block_impl.1} parent=1 // pred_check_branch
      %42 = sbr.rel (0) target = $region21
    $region20: #{_masked_residual_block_impl.1} parent=1 // pred_region
      _
    $region21: #{_masked_residual_block_impl.1} parent=1 // pred_fallthru
      _
    // Predicated region
    $region22: #{_masked_residual_block_impl.1} parent=1 // pred_check
      _
    $region23: #{_masked_residual_block_impl.1} parent=1 // pred_check_branch
      %44 = sbr.rel (0) target = $region25
    $region24: #{_masked_residual_block_impl.1} parent=1 // pred_region
      %45 = dma.done [#allocation3], 2048
    $region25: #{_masked_residual_block_impl.1} parent=1 // pred_fallthru
      _
    // Predicated region
    $region26: #{_masked_residual_block_impl.1} parent=1 // pred_check
      _
    $region27: #{_masked_residual_block_impl.1} parent=1 // pred_check_branch
      %47 = sbr.rel (0) target = $region29
    $region28: #{_masked_residual_block_impl.1} parent=1 // pred_region
      %48 = dma.done [#allocation6], 2048
    $region29: #{_masked_residual_block_impl.1} parent=1 // pred_fallthru
      _
    %v49 = vld [vmem:[%s0] sm:$0xff]
    %v50 = vmax.f32 %v49, 0.0
    %v51 = vld [vmem:[#allocation2] sm:$0xff]
    %v52 = vld [vmem:[#allocation2 + $0x8] sm:$0xff]
    %v53 = vld [vmem:[#allocation2 + $0x10] sm:$0xff]
    %v54 = vld [vmem:[#allocation2 + $0x18] sm:$0xff]
    %v55 = vld [vmem:[#allocation2 + $0x20] sm:$0xff]
    %v56 = vld [vmem:[#allocation2 + $0x28] sm:$0xff]
    %v57 = vld [vmem:[#allocation2 + $0x30] sm:$0xff]
    %v58 = vld [vmem:[#allocation2 + $0x38] sm:$0xff]
    %v59 = vld [vmem:[#allocation2 + $0x40] sm:$0xff]
    %v60 = vld [vmem:[#allocation2 + $0x48] sm:$0xff]
    %v61 = vld [vmem:[#allocation2 + $0x50] sm:$0xff]
    %v62 = vld [vmem:[#allocation2 + $0x58] sm:$0xff]
    %v63 = vld [vmem:[#allocation2 + $0x60] sm:$0xff]
    %v64 = vld [vmem:[#allocation2 + $0x68] sm:$0xff]
    %v65 = vld [vmem:[#allocation2 + $0x70] sm:$0xff]
    %v66 = vld [vmem:[#allocation2 + $0x78] sm:$0xff]
    %v67 = vld [vmem:[%s2] sm:$0x1]
    %v69 = vlaneseq
    %v70 = vshrl.u32 %v69, 7
    %v71 = vsub.s32 0, %v70
    %v72 = vrot.slane %v67, %v71
    %74 = vmatprep.subr.mxu0 0.0
    %75 = vmatpush1.msra.mxu0 %v66
    %76 = vmatprep.subr.mxu0 0.0
    %77 = vmatpush1.msra.mxu0 %v65
    %78 = vmatprep.subr.mxu0 0.0
    %79 = vmatpush1.msra.mxu0 %v64
    %80 = vmatprep.subr.mxu0 0.0
    %81 = vmatpush1.msra.mxu0 %v63
    %82 = vmatprep.subr.mxu0 0.0
    %83 = vmatpush1.msra.mxu0 %v62
    %84 = vmatprep.subr.mxu0 0.0
    %85 = vmatpush1.msra.mxu0 %v61
    %86 = vmatprep.subr.mxu0 0.0
    %87 = vmatpush1.msra.mxu0 %v60
    %88 = vmatprep.subr.mxu0 0.0
    %89 = vmatpush1.msra.mxu0 %v59
    %90 = vmatprep.subr.mxu0 0.0
    %91 = vmatpush1.msra.mxu0 %v58
    %92 = vmatprep.subr.mxu0 0.0
    %93 = vmatpush1.msra.mxu0 %v57
    %94 = vmatprep.subr.mxu0 0.0
    %95 = vmatpush1.msra.mxu0 %v56
    %96 = vmatprep.subr.mxu0 0.0
    %97 = vmatpush1.msra.mxu0 %v55
    %98 = vmatprep.subr.mxu0 0.0
    %99 = vmatpush1.msra.mxu0 %v54
    %100 = vmatprep.subr.mxu0 0.0
    %101 = vmatpush1.msra.mxu0 %v53
    %102 = vmatprep.subr.mxu0 0.0
    %103 = vmatpush1.msra.mxu0 %v52
    %104 = vmatprep.subr.mxu0 0.0
    %105 = vmatpush1.msra.mxu0 %v51
    %106 = vmatprep.subr.mxu0 0.0
    %107 = vmatpush2.msra.mxu0 0.0
    %108 = vmatprep.subr.mxu0 0.0
    %109 = vmatpush2.msra.mxu0 0.0
    %110 = vmatprep.subr.mxu0 0.0
    %111 = vmatpush2.msra.mxu0 0.0
    %112 = vmatprep.subr.mxu0 0.0
    %113 = vmatpush2.msra.mxu0 0.0
    %114 = vmatprep.subr.mxu0 0.0
    %115 = vmatpush2.msra.mxu0 0.0
    %116 = vmatprep.subr.mxu0 0.0
    %117 = vmatpush2.msra.mxu0 0.0
    %118 = vmatprep.subr.mxu0 0.0
    %119 = vmatpush2.msra.mxu0 0.0
    %120 = vmatprep.subr.mxu0 0.0
    %121 = vmatpush2.msra.mxu0 0.0
    %122 = vmatprep.subr.mxu0 0.0
    %123 = vmatpush2.msra.mxu0 0.0
    %124 = vmatprep.subr.mxu0 0.0
    %125 = vmatpush2.msra.mxu0 0.0
    %126 = vmatprep.subr.mxu0 0.0
    %127 = vmatpush2.msra.mxu0 0.0
    %128 = vmatprep.subr.mxu0 0.0
    %129 = vmatpush2.msra.mxu0 0.0
    %130 = vmatprep.subr.mxu0 0.0
    %131 = vmatpush2.msra.mxu0 0.0
    %132 = vmatprep.subr.mxu0 0.0
    %133 = vmatpush2.msra.mxu0 0.0
    %134 = vmatprep.subr.mxu0 0.0
    %135 = vmatpush2.msra.mxu0 0.0
    %136 = vmatprep.subr.mxu0 0.0
    %137 = vmatpush2.msra.mxu0 0.0
    %138 = vmatprep.mubr.f32.mxu0 0.0
    %139 = vmatmul.mubr.f32.gmra.mxu0 %v50
    %v140 = vpop.f32.mrf.mxu0
    %v141 = vadd.f32 %v72, %v140
    %v142 = vpop.f32.mrf.mxu0
    %143 = vdwg.mxu0
    %v144 = vmax.f32 %v141, 0.0
    %v145 = vld [vmem:[#allocation5] sm:$0xff]
    %v146 = vld [vmem:[#allocation5 + $0x8] sm:$0xff]
    %v147 = vld [vmem:[#allocation5 + $0x10] sm:$0xff]
    %v148 = vld [vmem:[#allocation5 + $0x18] sm:$0xff]
    %v149 = vld [vmem:[#allocation5 + $0x20] sm:$0xff]
    %v150 = vld [vmem:[#allocation5 + $0x28] sm:$0xff]
    %v151 = vld [vmem:[#allocation5 + $0x30] sm:$0xff]
    %v152 = vld [vmem:[#allocation5 + $0x38] sm:$0xff]
    %v153 = vld [vmem:[#allocation5 + $0x40] sm:$0xff]
    %v154 = vld [vmem:[#allocation5 + $0x48] sm:$0xff]
    %v155 = vld [vmem:[#allocation5 + $0x50] sm:$0xff]
    %v156 = vld [vmem:[#allocation5 + $0x58] sm:$0xff]
    %v157 = vld [vmem:[#allocation5 + $0x60] sm:$0xff]
    %v158 = vld [vmem:[#allocation5 + $0x68] sm:$0xff]
    %v159 = vld [vmem:[#allocation5 + $0x70] sm:$0xff]
    %v160 = vld [vmem:[#allocation5 + $0x78] sm:$0xff]
    %v161 = vld [vmem:[%s4] sm:$0x1]
    %v163 = vlaneseq
    %v164 = vshrl.u32 %v163, 7
    %v165 = vsub.s32 0, %v164
    %v166 = vrot.slane %v161, %v165
    %168 = vmatprep.subr.mxu0 0.0
    %169 = vmatpush1.msra.mxu0 %v160
    %170 = vmatprep.subr.mxu0 0.0
    %171 = vmatpush1.msra.mxu0 %v159
    %172 = vmatprep.subr.mxu0 0.0
    %173 = vmatpush1.msra.mxu0 %v158
    %174 = vmatprep.subr.mxu0 0.0
    %175 = vmatpush1.msra.mxu0 %v157
    %176 = vmatprep.subr.mxu0 0.0
    %177 = vmatpush1.msra.mxu0 %v156
    %178 = vmatprep.subr.mxu0 0.0
    %179 = vmatpush1.msra.mxu0 %v155
    %180 = vmatprep.subr.mxu0 0.0
    %181 = vmatpush1.msra.mxu0 %v154
    %182 = vmatprep.subr.mxu0 0.0
    %183 = vmatpush1.msra.mxu0 %v153
    %184 = vmatprep.subr.mxu0 0.0
    %185 = vmatpush1.msra.mxu0 %v152
    %186 = vmatprep.subr.mxu0 0.0
    %187 = vmatpush1.msra.mxu0 %v151
    %188 = vmatprep.subr.mxu0 0.0
    %189 = vmatpush1.msra.mxu0 %v150
    %190 = vmatprep.subr.mxu0 0.0
    %191 = vmatpush1.msra.mxu0 %v149
    %192 = vmatprep.subr.mxu0 0.0
    %193 = vmatpush1.msra.mxu0 %v148
    %194 = vmatprep.subr.mxu0 0.0
    %195 = vmatpush1.msra.mxu0 %v147
    %196 = vmatprep.subr.mxu0 0.0
    %197 = vmatpush1.msra.mxu0 %v146
    %198 = vmatprep.subr.mxu0 0.0
    %199 = vmatpush1.msra.mxu0 %v145
    %200 = vmatprep.subr.mxu0 0.0
    %201 = vmatpush2.msra.mxu0 0.0
    %202 = vmatprep.subr.mxu0 0.0
    %203 = vmatpush2.msra.mxu0 0.0
    %204 = vmatprep.subr.mxu0 0.0
    %205 = vmatpush2.msra.mxu0 0.0
    %206 = vmatprep.subr.mxu0 0.0
    %207 = vmatpush2.msra.mxu0 0.0
    %208 = vmatprep.subr.mxu0 0.0
    %209 = vmatpush2.msra.mxu0 0.0
    %210 = vmatprep.subr.mxu0 0.0
    %211 = vmatpush2.msra.mxu0 0.0
    %212 = vmatprep.subr.mxu0 0.0
    %213 = vmatpush2.msra.mxu0 0.0
    %214 = vmatprep.subr.mxu0 0.0
    %215 = vmatpush2.msra.mxu0 0.0
    %216 = vmatprep.subr.mxu0 0.0
    %217 = vmatpush2.msra.mxu0 0.0
    %218 = vmatprep.subr.mxu0 0.0
    %219 = vmatpush2.msra.mxu0 0.0
    %220 = vmatprep.subr.mxu0 0.0
    %221 = vmatpush2.msra.mxu0 0.0
    %222 = vmatprep.subr.mxu0 0.0
    %223 = vmatpush2.msra.mxu0 0.0
    %224 = vmatprep.subr.mxu0 0.0
    %225 = vmatpush2.msra.mxu0 0.0
    %226 = vmatprep.subr.mxu0 0.0
    %227 = vmatpush2.msra.mxu0 0.0
    %228 = vmatprep.subr.mxu0 0.0
    %229 = vmatpush2.msra.mxu0 0.0
    %230 = vmatprep.subr.mxu0 0.0
    %231 = vmatpush2.msra.mxu0 0.0
    %232 = vmatprep.mubr.f32.mxu0 0.0
    %233 = vmatmul.mubr.f32.gmra.mxu0 %v144
    %v234 = vpop.f32.mrf.mxu0
    %v235 = vadd.f32 %v166, %v234
    %v236 = vpop.f32.mrf.mxu0
    %237 = vdwg.mxu0
    %v238 = vadd.f32 %v49, %v235
    %239 = vst [vmem:[#allocation7] sm:$0xff] %v238
    // Predicated region
    $region30: #{_masked_residual_block_impl.1} parent=1 // pred_check
      _
    $region31: #{_masked_residual_block_impl.1} parent=1 // pred_check_branch
      %241 = sbr.rel (0) target = $region33
    $region32: #{_masked_residual_block_impl.1} parent=1 // pred_region
      %s243 = ssub.s32 128, 128
      %244 = vsyncadd [#allocation4], %s243
      %s246 = sshll.u32 [#allocation7], 4
      %s247 = int_to_ptr.vmem [resolvable:$true] %s246
      %249 = dma.vmem_to_hbm [thread:$0]  %s247, 128, %s5, [#allocation4]
    $region33: #{_masked_residual_block_impl.1} parent=1 // pred_fallthru
      _
    // Predicated region
    $region34: #{_masked_residual_block_impl.1} parent=1 // pred_check
      _
    $region35: #{_masked_residual_block_impl.1} parent=1 // pred_check_branch
      %251 = sbr.rel (0) target = $region37
    $region36: #{_masked_residual_block_impl.1} parent=1 // pred_region
      %252 = dma.done [#allocation4], 128
    $region37: #{_masked_residual_block_impl.1} parent=1 // pred_fallthru
      _
    %253 = vsyncpa [#allocation3], 1
    %254 = vsyncpa [#allocation6], 1
    %255 = vsyncpa [#allocation4], 1

</llo_original>
